<compile_context>
chip_gen: v7x
topology: tpu7x:2x2x1
jax: 0.10.0
libtpu: 0.0.40
codegen_flags: <defaults>
</compile_context>

<pallas_src>
import functools
import math

import jax
import jax.numpy as jnp
from jax.experimental import pallas as pl
from jax.experimental.pallas import tpu as pltpu


_RESIDENT_TABLE_MAX_BYTES = 8 * 1024 * 1024    # pin table in VMEM below this
_VMEM_LIMIT_BYTES = 32 * 1024 * 1024           # explicit scoped-VMEM limit
_VMEM_TILE_BUDGET = 20 * 1024 * 1024           # sizing budget (headroom under limit)
_GATHER_SEM_RING = 8                           # in-flight row DMAs (large-V path)


# ----------------------------------------------------------------------------
# Tile sizing
# ----------------------------------------------------------------------------
def _pick_batch_tile(batch, per_seq_bytes, fixed_bytes, budget):
    """Largest divisor bt of `batch` whose per-step VMEM stays under budget.

    Prefers sublane-friendly tiles (bt == batch or bt % 8 == 0); falls back to
    any fitting divisor; always returns at least 1 (never the old full-batch
    blow-up fallback).
    """
    def fits(bt):
        return fixed_bytes + bt * per_seq_bytes <= budget

    divisors = [d for d in range(1, batch + 1) if batch % d == 0]
    preferred = [d for d in divisors if (d == batch or d % 8 == 0) and fits(d)]
    if preferred:
        return max(preferred)
    fitting = [d for d in divisors if fits(d)]
    return max(fitting) if fitting else 1


# ----------------------------------------------------------------------------
# Fast path: embedding table resident in VMEM, gather via one-hot MXU matmul
# ----------------------------------------------------------------------------
def _embed_pe_resident_kernel(ids_ref, emb_ref, pe_ref, out_ref):
    """Grid: (B // bt,).

    ids_ref : VMEM (bt, S) int32
    emb_ref : VMEM (V, D)   -- resident (constant index_map)
    pe_ref  : VMEM (S, D)   -- resident (constant index_map)
    out_ref : VMEM (bt, S, D)
    """
    bt, seq = ids_ref.shape
    vocab, d = emb_ref.shape

    ids = ids_ref[...]                                               # (bt, S)
    # One-hot built on the VPU; the row gather becomes a single MXU matmul
    # (MXU is otherwise idle in this kernel), zero per-token DMAs.
    one_hot = (ids[:, :, None] ==
               jax.lax.broadcasted_iota(jnp.int32, (bt, seq, vocab), 2)
               ).astype(emb_ref.dtype)                               # (bt, S, V)
    one_hot = one_hot.reshape(bt * seq, vocab)                       # layout-preserving when S % 8 == 0
    rows = jnp.dot(one_hot, emb_ref[...],
                   preferred_element_type=jnp.float32)               # (bt*S, D) f32
    rows = rows.reshape(bt, seq, d)
    pe = pe_ref[...].astype(jnp.float32)[None, :, :]                 # (1, S, D)
    out_ref[...] = (rows + pe).astype(out_ref.dtype)


def _embedding_resident(ids, emb_table, pe_slab):
    B, S = ids.shape
    V, D = emb_table.shape
    itemsize = jnp.dtype(emb_table.dtype).itemsize

    fixed = 2 * V * D * itemsize + 2 * S * D * 4                     # table + PE
    per_seq = S * (2 * D * itemsize + V * 4 + D * 4 + 8)             # out(x2) + one-hot + f32 rows + ids
    bt = _pick_batch_tile(B, per_seq, fixed, _VMEM_TILE_BUDGET)

    return pl.pallas_call(
        _embed_pe_resident_kernel,
        out_shape=jax.ShapeDtypeStruct((B, S, D), emb_table.dtype),
        grid_spec=pltpu.PrefetchScalarGridSpec(
            num_scalar_prefetch=0,
            grid=(B // bt,),
            in_specs=[
                pl.BlockSpec((bt, S), lambda g: (g, 0)),             # ids tile
                pl.BlockSpec((V, D), lambda g: (0, 0)),              # table, resident
                pl.BlockSpec((S, D), lambda g: (0, 0)),              # PE, resident
            ],
            out_specs=pl.BlockSpec((bt, S, D), lambda g: (g, 0, 0)),
        ),
        compiler_params=pltpu.CompilerParams(
            dimension_semantics=("parallel",),
            vmem_limit_bytes=_VMEM_LIMIT_BYTES),
    )(ids.astype(jnp.int32), emb_table, pe_slab)


# ----------------------------------------------------------------------------
# Large-vocab path: table stays in HBM, per-row DMA gather with a sliding window
# ----------------------------------------------------------------------------
def _embed_pe_gather_kernel(ids_ref, emb_hbm, pe_ref, out_ref, sems, *, ring):
    """Grid: (B // bt,).

    ids_ref : SMEM (B*S,) int32 (scalar prefetch)
    emb_hbm : HBM  (V, D)       (memory_space=pl.ANY, manual DMA)
    pe_ref  : VMEM (S, D)       (resident)
    out_ref : VMEM (bt, S, D)   (rows are gathered directly into it)
    sems    : DMA semaphore ring (ring,)
    """
    g = pl.program_id(0)
    bt, seq, d = out_ref.shape
    n = bt * seq
    prime = min(ring, n)

    def row_copy(t):
        bi = t // seq
        si = t - bi * seq
        tok = ids_ref[g * n + t]
        return pltpu.make_async_copy(
            emb_hbm.at[pl.ds(tok, 1), :],
            out_ref.at[bi, pl.ds(si, 1), :],
            sems.at[t % ring],
        )

    # Prime the ring.
    @pl.loop(0, prime)
    def _start(t):
        row_copy(t).start()

    # Sliding window: wait row t, immediately issue row t + prime.
    # TODO(synk): dedup repeated token ids / unroll issue loop to raise the
    # descriptor-issue rate further on this path.
    @pl.loop(0, n)
    def _drain(t):
        row_copy(t).wait()

        @pl.when(t + prime < n)
        def _():
            row_copy(t + prime).start()

    pe = pe_ref[...].astype(jnp.float32)[None, :, :]
    out_ref[...] = (out_ref[...].astype(jnp.float32) + pe).astype(out_ref.dtype)


def _embedding_hbm_gather(ids, emb_table, pe_slab):
    B, S = ids.shape
    V, D = emb_table.shape
    itemsize = jnp.dtype(emb_table.dtype).itemsize

    fixed = 2 * S * D * 4                                            # PE
    per_seq = 2 * S * D * itemsize                                   # out (double-buffered)
    bt = _pick_batch_tile(B, per_seq, fixed, _VMEM_TILE_BUDGET)

    ids_flat = ids.reshape(B * S).astype(jnp.int32)
    kernel = functools.partial(_embed_pe_gather_kernel, ring=_GATHER_SEM_RING)
    return pl.pallas_call(
        kernel,
        out_shape=jax.ShapeDtypeStruct((B, S, D), emb_table.dtype),
        grid_spec=pltpu.PrefetchScalarGridSpec(
            num_scalar_prefetch=1,                                   # ids -> SMEM
            grid=(B // bt,),
            in_specs=[
                pl.BlockSpec(memory_space=pl.ANY),                   # table stays in HBM
                pl.BlockSpec((S, D), lambda g, ids: (0, 0)),         # PE, resident
            ],
            out_specs=pl.BlockSpec((bt, S, D), lambda g, ids: (g, 0, 0)),
            scratch_shapes=[pltpu.SemaphoreType.DMA((_GATHER_SEM_RING,))],
        ),
        compiler_params=pltpu.CompilerParams(
            dimension_semantics=("parallel",),
            vmem_limit_bytes=_VMEM_LIMIT_BYTES),
    )(ids_flat, emb_table, pe_slab)


# ----------------------------------------------------------------------------
# Public entry point
# ----------------------------------------------------------------------------
def embedding_with_pe(ids, emb_table, pe_slab):
    """ids: (B, S) int32; emb_table: (V, D); pe_slab: (S, D) f32 -> (B, S, D)."""
    B, S = ids.shape
    V, D = emb_table.shape
    assert pe_slab.shape == (S, D)
    itemsize = jnp.dtype(emb_table.dtype).itemsize
    if V * D * itemsize <= _RESIDENT_TABLE_MAX_BYTES:
        return _embedding_resident(ids, emb_table, pe_slab)
    return _embedding_hbm_gather(ids, emb_table, pe_slab)


def sinusoidal_pe(max_len, d_model):
    """Standard 'Attention Is All You Need' positional encoding table (max_len, d)."""
    pos = jnp.arange(max_len, dtype=jnp.float32)[:, None]                     # (L, 1)
    div = jnp.exp(jnp.arange(0, d_model, 2, dtype=jnp.float32)
                  * (-math.log(10000.0) / d_model))                           # (D/2,)
    angles = pos * div[None, :]                                               # (L, D/2)
    pe = jnp.zeros((max_len, d_model), jnp.float32)
    pe = pe.at[:, 0::2].set(jnp.sin(angles))
    pe = pe.at[:, 1::2].set(jnp.cos(angles))
    return pe


if __name__ == "__main__":
    vocab_size, embed_dim, max_len = 64, 128, 16
    B, S = 2, 8

    key = jax.random.PRNGKey(0)
    k_emb, k_ids = jax.random.split(key)

    # nn.Embedding default init: weight ~ N(0, 1)
    emb_table = jax.random.normal(k_emb, (vocab_size, embed_dim), dtype=jnp.float32)
    ids = jax.random.randint(k_ids, (B, S), 0, vocab_size, dtype=jnp.int32)
    pe_full = sinusoidal_pe(max_len, embed_dim)

    out = embedding_with_pe(ids, emb_table, pe_full[:S])
    out = jax.block_until_ready(out)

    # Pure-JAX reference check (embedding lookup + PE add).
    ref = emb_table[ids] + pe_full[:S][None, :, :]
    assert out.shape == (B, S, embed_dim)
    assert jnp.allclose(out, ref, atol=1e-5, rtol=1e-5), "kernel output mismatch vs reference"

    print("KERNEL_OK")
</pallas_src>

<mosaic_0001>
module attributes {stable_mosaic.version = 11 : i64} {
  func.func @_embed_pe_resident_kernel(%arg0: i32, %arg1: memref<2x8xi32, #tpu.memory_space<vmem>>, %arg2: memref<64x128xf32, #tpu.memory_space<vmem>>, %arg3: memref<8x128xf32, #tpu.memory_space<vmem>>, %arg4: memref<2x8x128xf32, #tpu.memory_space<vmem>>) attributes {dimension_semantics = [#tpu.dimension_semantics<parallel>], iteration_bounds = array<i64: 1>, scalar_prefetch = 0 : i64, scratch_operands = 0 : i64, tpu.core_type = #tpu.core_type<tc>, window_params = [{transform_indices = @transform_0, window_bounds = array<i64: 2, 8>}, {pipeline_mode = #tpu.pipeline_mode<synchronous>, transform_indices = @transform_1, window_bounds = array<i64: 64, 128>}, {pipeline_mode = #tpu.pipeline_mode<synchronous>, transform_indices = @transform_2, window_bounds = array<i64: 8, 128>}, {transform_indices = @transform_3, window_bounds = array<i64: 2, 8, 128>}]} {
    %c0 = arith.constant 0 : index
    %c0_0 = arith.constant 0 : index
    %0 = vector.load %arg1[%c0, %c0_0] : memref<2x8xi32, #tpu.memory_space<vmem>>, vector<2x8xi32>
    %1 = vector.shape_cast %0 : vector<2x8xi32> to vector<2x8x1xi32>
    %2 = tpu.iota {dimensions = array<i32: 2>} : vector<2x8x64xi32>
    %3 = vector.broadcast %1 : vector<2x8x1xi32> to vector<2x8x64xi32>
    %4 = arith.cmpi eq, %3, %2 : vector<2x8x64xi32>
    %5 = arith.extui %4 : vector<2x8x64xi1> to vector<2x8x64xi32>
    %6 = arith.sitofp %5 : vector<2x8x64xi32> to vector<2x8x64xf32>
    %7 = vector.shape_cast %6 : vector<2x8x64xf32> to vector<16x64xf32>
    %c0_1 = arith.constant 0 : index
    %c0_2 = arith.constant 0 : index
    %8 = vector.load %arg2[%c0_1, %c0_2] : memref<64x128xf32, #tpu.memory_space<vmem>>, vector<64x128xf32>
    %cst = arith.constant dense<0.000000e+00> : vector<16x128xf32>
    %9 = tpu.matmul %7, %8, %cst {dimension_numbers = #tpu.dot_dimension_numbers<[1], [0], [0], [1], [0, 0, 1, 1], [], []>} : vector<16x64xf32>, vector<64x128xf32>, vector<16x128xf32> -> vector<16x128xf32>
    %10 = vector.shape_cast %9 : vector<16x128xf32> to vector<2x8x128xf32>
    %c0_3 = arith.constant 0 : index
    %c0_4 = arith.constant 0 : index
    %11 = vector.load %arg3[%c0_3, %c0_4] : memref<8x128xf32, #tpu.memory_space<vmem>>, vector<8x128xf32>
    %12 = vector.shape_cast %11 : vector<8x128xf32> to vector<1x8x128xf32>
    %13 = vector.broadcast %12 : vector<1x8x128xf32> to vector<2x8x128xf32>
    %14 = arith.addf %10, %13 : vector<2x8x128xf32>
    %c0_5 = arith.constant 0 : index
    %c0_6 = arith.constant 0 : index
    %c0_7 = arith.constant 0 : index
    %15 = vector.load %arg4[%c0_5, %c0_6, %c0_7] : memref<2x8x128xf32, #tpu.memory_space<vmem>>, vector<2x8x128xf32>
    tpu.vector_store %arg4[%c0_5, %c0_6, %c0_7], %14 {strides = array<i32>} : memref<2x8x128xf32, #tpu.memory_space<vmem>>, vector<2x8x128xf32>,
    return
  }
  func.func @transform_0(%arg0: i32) -> (i32, i32) {
    %c0_i32 = arith.constant 0 : i32
    %c0_i32_0 = arith.constant 0 : i32
    return %arg0, %c0_i32 : i32, i32
  }
  func.func @transform_1(%arg0: i32) -> (i32, i32) {
    %c0_i32 = arith.constant 0 : i32
    %c0_i32_0 = arith.constant 0 : i32
    %c0_i32_1 = arith.constant 0 : i32
    return %c0_i32, %c0_i32_0 : i32, i32
  }
  func.func @transform_2(%arg0: i32) -> (i32, i32) {
    %c0_i32 = arith.constant 0 : i32
    %c0_i32_0 = arith.constant 0 : i32
    %c0_i32_1 = arith.constant 0 : i32
    return %c0_i32, %c0_i32_0 : i32, i32
  }
  func.func @transform_3(%arg0: i32) -> (i32, i32, i32) {
    %c0_i32 = arith.constant 0 : i32
    %c0_i32_0 = arith.constant 0 : i32
    %c0_i32_1 = arith.constant 0 : i32
    return %arg0, %c0_i32, %c0_i32_0 : i32, i32, i32
  }
}

</mosaic_0001>

<llo_original>
// kernel: tpu_custom_call.1
$region0: #{tpu_custom_call.1}
  #allocation0 [shape = 'u32[]', space=smem, size = 0x4, offset = 0x4, fixed_abs, tag = 'smem constant byte address 0x4 - core index']
  #allocation1 [shape = 'u32[144,128]{1,0:T(1,128)}', space=vmem, size = 0x12000, scoped, tag = 'internal scratch']
  %s0 = inlined_call_operand.hbm [shape: s32[2,8], index: 0, kind: input, shape index: {}]
  %s1 = inlined_call_operand.hbm [shape: f32[64,128], index: 1, kind: input, shape index: {}]
  %s2 = inlined_call_operand.hbm [shape: f32[8,128], index: 2, kind: input, shape index: {}]
  %s3 = inlined_call_operand.hbm [shape: f32[2,8,128], index: 3, kind: output, shape index: {}]
  %s4 = sld [smem:[#allocation0]]
  $region34: #{tpu_custom_call.1} parent=0
    _
  %s6 = ssub.s32 1, %s4
  %s7 = scalar_select 0, %s6, %s4
  $region1: #{tpu_custom_call.1} parent=0
    #allocation2 [shape = 'u8[1024]{0}', space=vmem, size = 0x400, scoped, tag = 'input window, operand 0, single buffered']
    #allocation3 [shape = 's32[1]{0}', space=sflag, size = 0x4, scoped, tag = 'scoped memory for tpu_custom_call.1']
    #allocation4 [shape = 's32[1]{0}', space=sflag, size = 0x4, scoped, tag = 'scoped memory for tpu_custom_call.1']
    #allocation5 [shape = 'u8[32768]{0}', space=vmem, size = 0x8000, scoped, tag = 'input window, operand 1, single buffered']
    #allocation6 [shape = 's32[1]{0}', space=sflag, size = 0x4, scoped, tag = 'scoped memory for tpu_custom_call.1']
    #allocation7 [shape = 'u8[4096]{0}', space=vmem, size = 0x1000, scoped, tag = 'input window, operand 2, single buffered']
    #allocation8 [shape = 'u8[8192]{0}', space=vmem, size = 0x2000, scoped, tag = 'output window, operand 0, single buffered']
    %8 = vsyncpa [#allocation3], 0
    %9 = vsyncpa [#allocation6], 0
    %10 = vsyncpa [#allocation4], 0
    // Predicated region
    $region2: #{tpu_custom_call.1} parent=1 // pred_check
      _
    $region3: #{tpu_custom_call.1} parent=1 // pred_check_branch
      %12 = sbr.rel (0) target = $region5
    $region4: #{tpu_custom_call.1} parent=1 // pred_region
      %s14 = ssub.s32 32, 32
      %15 = vsyncadd [#allocation3], %s14
      %s17 = sshll.u32 [#allocation2], 4
      %s18 = int_to_ptr.vmem [resolvable:$true] %s17
      %20 = dma.hbm_to_vmem [thread:$0]  %s0, 32, %s18, [#allocation3]
    $region5: #{tpu_custom_call.1} parent=1 // pred_fallthru
      _
    // Predicated region
    $region6: #{tpu_custom_call.1} parent=1 // pred_check
      _
    $region7: #{tpu_custom_call.1} parent=1 // pred_check_branch
      %22 = sbr.rel (0) target = $region9
    $region8: #{tpu_custom_call.1} parent=1 // pred_region
      %s24 = ssub.s32 1024, 1024
      %25 = vsyncadd [#allocation6], %s24
      %s26 = sshll.u32 [#allocation5], 4
      %s27 = int_to_ptr.vmem [resolvable:$true] %s26
      %32 = dma.hbm_to_vmem [thread:$0]  %s1, 1024, %s27, [#allocation6], 128, 128, 8
    $region9: #{tpu_custom_call.1} parent=1 // pred_fallthru
      _
    // Predicated region
    $region10: #{tpu_custom_call.1} parent=1 // pred_check
      _
    $region11: #{tpu_custom_call.1} parent=1 // pred_check_branch
      %34 = sbr.rel (0) target = $region13
    $region12: #{tpu_custom_call.1} parent=1 // pred_region
      %s36 = ssub.s32 128, 128
      %37 = vsyncadd [#allocation6], %s36
      %s39 = sshll.u32 [#allocation7], 4
      %s40 = int_to_ptr.vmem [resolvable:$true] %s39
      %42 = dma.hbm_to_vmem [thread:$0]  %s2, 128, %s40, [#allocation6]
    $region13: #{tpu_custom_call.1} parent=1 // pred_fallthru
      _
    // Predicated region
    $region14: #{tpu_custom_call.1} parent=1 // pred_check
      _
    $region15: #{tpu_custom_call.1} parent=1 // pred_check_branch
      %44 = sbr.rel (0) target = $region17
    $region16: #{tpu_custom_call.1} parent=1 // pred_region
      %45 = dma.done [#allocation3], 32
    $region17: #{tpu_custom_call.1} parent=1 // pred_fallthru
      _
    // Predicated region
    $region18: #{tpu_custom_call.1} parent=1 // pred_check
      _
    $region19: #{tpu_custom_call.1} parent=1 // pred_check_branch
      %47 = sbr.rel (0) target = $region21
    $region20: #{tpu_custom_call.1} parent=1 // pred_region
      %48 = dma.done [#allocation6], 1024
    $region21: #{tpu_custom_call.1} parent=1 // pred_fallthru
      _
    // Predicated region
    $region22: #{tpu_custom_call.1} parent=1 // pred_check
      _
    $region23: #{tpu_custom_call.1} parent=1 // pred_check_branch
      %50 = sbr.rel (0) target = $region25
    $region24: #{tpu_custom_call.1} parent=1 // pred_region
      %51 = dma.done [#allocation6], 128
    $region25: #{tpu_custom_call.1} parent=1 // pred_fallthru
      _
    %v52 = vld [vmem:[#allocation2] sm:$0x3]
    %v53 = vlaneseq
    %v54 = vshrl.u32 %v53, 7
    %v55 = vsub.s32 0, %v54
    %v56 = vrot.slane %v52, %v55
    %58 = vbcast.lane.b32.xlu0 %v56, 256
    %v59 = vpop.permute.xlu0 %58
    %v60 = vlaneseq
    %v61 = vshrl.u32 %v60, 7
    %v62 = vsub.s32 1, %v61
    %v63 = vrot.slane %v52, %v62
    %65 = vbcast.lane.b32.xlu0 %v63, 256
    %v66 = vpop.permute.xlu0 %65
    %v67 = vlaneseq
    %v68 = vand.u32 %v67, 127
    %vm69 = vcmp.eq.s32.totalorder %v59, %v68
    %vm70 = vcmp.eq.s32.totalorder %v66, %v68
    %v71 = vsel %vm69, 1, 0
    %v72 = vsel %vm70, 1, 0
    %v73 = vcvt.s32.f32 %v71
    %v74 = vcvt.s32.f32 %v72
    %v75 = vld [vmem:[#allocation5] sm:$0xff]
    %v76 = vld [vmem:[#allocation5 + $0x8] sm:$0xff]
    %v77 = vld [vmem:[#allocation5 + $0x10] sm:$0xff]
    %v78 = vld [vmem:[#allocation5 + $0x18] sm:$0xff]
    %v79 = vld [vmem:[#allocation5 + $0x20] sm:$0xff]
    %v80 = vld [vmem:[#allocation5 + $0x28] sm:$0xff]
    %v81 = vld [vmem:[#allocation5 + $0x30] sm:$0xff]
    %v82 = vld [vmem:[#allocation5 + $0x38] sm:$0xff]
    %vm83 = vcmask 523264
    %v85 = vsel %vm83, %v73, 0
    %v88 = vsel %vm83, %v74, 0
    %90 = vmatprep.subr.mxu0 0.0
    %91 = vmatpush1.msra.mxu0 %v75
    %92 = vmatprep.subr.mxu0 0.0
    %93 = vmatpush1.msra.mxu0 %v76
    %94 = vmatprep.subr.mxu0 0.0
    %95 = vmatpush1.msra.mxu0 %v77
    %96 = vmatprep.subr.mxu0 0.0
    %97 = vmatpush1.msra.mxu0 %v78
    %98 = vmatprep.subr.mxu0 0.0
    %99 = vmatpush1.msra.mxu0 %v79
    %100 = vmatprep.subr.mxu0 0.0
    %101 = vmatpush1.msra.mxu0 %v80
    %102 = vmatprep.subr.mxu0 0.0
    %103 = vmatpush1.msra.mxu0 %v81
    %104 = vmatprep.subr.mxu0 0.0
    %105 = vmatpush1.msra.mxu0 %v82
    %106 = vmatprep.subr.mxu0 0.0
    %107 = vmatpush1.msra.mxu0 0.0
    %108 = vmatprep.subr.mxu0 0.0
    %109 = vmatpush1.msra.mxu0 0.0
    %110 = vmatprep.subr.mxu0 0.0
    %111 = vmatpush1.msra.mxu0 0.0
    %112 = vmatprep.subr.mxu0 0.0
    %113 = vmatpush1.msra.mxu0 0.0
    %114 = vmatprep.subr.mxu0 0.0
    %115 = vmatpush1.msra.mxu0 0.0
    %116 = vmatprep.subr.mxu0 0.0
    %117 = vmatpush1.msra.mxu0 0.0
    %118 = vmatprep.subr.mxu0 0.0
    %119 = vmatpush1.msra.mxu0 0.0
    %120 = vmatprep.subr.mxu0 0.0
    %121 = vmatpush1.msra.mxu0 0.0
    %122 = vmatprep.subr.mxu0 0.0
    %123 = vmatpush1.msra.mxu0 0.0
    %124 = vmatprep.subr.mxu0 0.0
    %125 = vmatpush1.msra.mxu0 0.0
    %126 = vmatprep.subr.mxu0 0.0
    %127 = vmatpush1.msra.mxu0 0.0
    %128 = vmatprep.subr.mxu0 0.0
    %129 = vmatpush1.msra.mxu0 0.0
    %130 = vmatprep.subr.mxu0 0.0
    %131 = vmatpush1.msra.mxu0 0.0
    %132 = vmatprep.subr.mxu0 0.0
    %133 = vmatpush1.msra.mxu0 0.0
    %134 = vmatprep.subr.mxu0 0.0
    %135 = vmatpush1.msra.mxu0 0.0
    %136 = vmatprep.subr.mxu0 0.0
    %137 = vmatpush1.msra.mxu0 0.0
    %138 = vmatprep.subr.mxu0 0.0
    %139 = vmatpush1.msra.mxu0 0.0
    %140 = vmatprep.subr.mxu0 0.0
    %141 = vmatpush1.msra.mxu0 0.0
    %142 = vmatprep.subr.mxu0 0.0
    %143 = vmatpush1.msra.mxu0 0.0
    %144 = vmatprep.subr.mxu0 0.0
    %145 = vmatpush1.msra.mxu0 0.0
    %146 = vmatprep.subr.mxu0 0.0
    %147 = vmatpush1.msra.mxu0 0.0
    %148 = vmatprep.subr.mxu0 0.0
    %149 = vmatpush1.msra.mxu0 0.0
    %150 = vmatprep.subr.mxu0 0.0
    %151 = vmatpush1.msra.mxu0 0.0
    %152 = vmatprep.subr.mxu0 0.0
    %153 = vmatpush1.msra.mxu0 0.0
    %154 = vmatprep.mubr.f32.mxu0 0.0
    %155 = vmatmul.mubr.f32.gmra.mrb[0].mxu0 %v85
    %v156 = vpop.f32.mrb[0].mxu0
    %v157 = vadd.f32 0.0, %v156
    %v158 = vpop.f32.mrb[0].mxu0
    %159 = vmatprep.mubr.f32.mxu0 0.0
    %160 = vmatmul.mubr.f32.gmra.mrb[0].mxu0 %v88
    %v161 = vpop.f32.mrb[0].mxu0
    %v162 = vadd.f32 0.0, %v161
    %v163 = vpop.f32.mrb[0].mxu0
    %164 = vdwg.mxu0
    %v165 = vld [vmem:[#allocation7] sm:$0xff]
    %v166 = vadd.f32 %v157, %v165
    %v167 = vadd.f32 %v162, %v165
    %168 = vst [vmem:[#allocation8] sm:$0xff] %v166
    %169 = vst [vmem:[#allocation8 + $0x8] sm:$0xff] %v167
    // Predicated region
    $region26: #{tpu_custom_call.1} parent=1 // pred_check
      _
    $region27: #{tpu_custom_call.1} parent=1 // pred_check_branch
      %171 = sbr.rel (0) target = $region29
    $region28: #{tpu_custom_call.1} parent=1 // pred_region
      %s173 = ssub.s32 256, 256
      %174 = vsyncadd [#allocation4], %s173
      %s175 = sshll.u32 [#allocation8], 4
      %s176 = int_to_ptr.vmem [resolvable:$true] %s175
      %181 = dma.vmem_to_hbm [thread:$0]  %s176, 256, %s3, [#allocation4], 128, 128, 8
    $region29: #{tpu_custom_call.1} parent=1 // pred_fallthru
      _
    // Predicated region
    $region30: #{tpu_custom_call.1} parent=1 // pred_check
      _
    $region31: #{tpu_custom_call.1} parent=1 // pred_check_branch
      %183 = sbr.rel (0) target = $region33
    $region32: #{tpu_custom_call.1} parent=1 // pred_region
      %184 = dma.done [#allocation4], 256
    $region33: #{tpu_custom_call.1} parent=1 // pred_fallthru
      _
    %185 = vsyncpa [#allocation3], 1
    %186 = vsyncpa [#allocation6], 1
    %187 = vsyncpa [#allocation4], 1

</llo_original>
